<compile_context>
chip_gen: v7x
topology: tpu7x:2x2x1
jax: 0.10.0
libtpu: 0.0.40
codegen_flags: <defaults>
</compile_context>

<pallas_src>
import functools

import jax
import jax.numpy as jnp
from jax.experimental import pallas as pl
from jax.experimental.pallas import tpu as pltpu

_TARGET_BLOCK_BYTES = 4 * 1024 * 1024   # ~4 MiB per block (x4 buffers = 16 MiB)
_MIN_GRID_STEPS = 4                     # >= 2 blocks per TensorCore on v7x
_VMEM_LIMIT_BYTES = 32 * 1024 * 1024    # headroom for v5e's 16 MiB scoped default


def _self_gate_kernel(x_ref, o_ref, *, c):
    # c = 0.5 * scale (static Python float, folded at trace time).
    # x * (2*sigmoid(|x|*scale) - 1) == x * tanh(|x| * c)
    x = x_ref[...].astype(jnp.float32)   # f32 internal math even for bf16 I/O
    o_ref[...] = (x * jnp.tanh(jnp.abs(x) * c)).astype(o_ref.dtype)


def _fused_jnp(x, c):
    """Single-pass fused fallback for shapes that would otherwise need padding."""
    xf = x.astype(jnp.float32)
    return (xf * jnp.tanh(jnp.abs(xf) * c)).astype(x.dtype)


def _choose_lanes(n):
    """Largest lane width (multiple of 128) that divides n, else None."""
    for lanes in (1024, 512, 256, 128):
        if n % lanes == 0:
            return lanes
    return None


def self_gate(x, base=None, *, donate=False):
    """SelfGate forward: x * (2*sigmoid(|x| * scale) - 1), scale from `base`.

    `base` must be a static Python float / None (it is baked into the kernel;
    a traced value would fail the guard and each new value recompiles).
    Matches the PyTorch constructor guard: base None / == 1.0 / < 0.0 -> 1.0.
    Set donate=True only if the caller donates `x` (adds input/output aliasing).
    """
    # TODO(synk): per-feature beta path (use_beta=True) is not implemented; the
    # original constructor for that branch is broken (undefined `beta`).
    if base is None or base == 1.0 or base < 0.0:
        scale = 1.0
    else:
        scale = float(base)
    c = 0.5 * scale                       # fold constants: one vmul in-kernel

    orig_shape = x.shape
    n = x.size
    if n == 0:
        return x

    lanes = _choose_lanes(n)
    if lanes is None:
        # Misaligned element count: pad+kernel+slice would be 3 HBM passes for
        # a memory-bound op; a fused jnp expression is a single pass and wins.
        return jnp.reshape(_fused_jnp(jnp.reshape(x, (-1,)), c), orig_shape)

    rows = n // lanes
    x2d = jnp.reshape(x, (rows, lanes))

    # Block rows: sized by bytes (~4 MiB), rounded to the dtype's sublane
    # packing multiple (8 for 4-byte, 16 for 2-byte, 32 for 1-byte dtypes).
    itemsize = jnp.dtype(x.dtype).itemsize
    row_mult = max(8, 32 // itemsize)
    max_rows_by_bytes = max(
        row_mult,
        (_TARGET_BLOCK_BYTES // (lanes * itemsize)) // row_mult * row_mult,
    )
    if rows <= row_mult * _MIN_GRID_STEPS:
        # Tiny tensor: one block covering the full extent (or byte cap).
        block_rows = min(rows, max_rows_by_bytes)
    else:
        # Non-trivial tensor: guarantee >= _MIN_GRID_STEPS grid steps so both
        # v7x TensorCores get work, without exceeding the byte target.
        split_rows = pl.cdiv(pl.cdiv(rows, _MIN_GRID_STEPS), row_mult) * row_mult
        block_rows = min(max_rows_by_bytes, split_rows)

    grid = (pl.cdiv(rows, block_rows),)

    extra = {}
    if donate:
        # Same shape/dtype elementwise op: safe to write into the input buffer
        # when the caller donates it (halves HBM footprint, no bandwidth change).
        extra["input_output_aliases"] = {0: 0}

    out2d = pl.pallas_call(
        functools.partial(_self_gate_kernel, c=c),
        out_shape=jax.ShapeDtypeStruct((rows, lanes), x.dtype),
        grid=grid,
        in_specs=[pl.BlockSpec((block_rows, lanes), lambda i: (i, 0))],
        out_specs=pl.BlockSpec((block_rows, lanes), lambda i: (i, 0)),
        compiler_params=pltpu.CompilerParams(
            dimension_semantics=("parallel",),
            vmem_limit_bytes=_VMEM_LIMIT_BYTES,
        ),
        **extra,
    )(x2d)

    return jnp.reshape(out2d, orig_shape)


def _self_gate_ref(x, base=None):
    xf = x.astype(jnp.float32)
    scale = 1.0 if (base is None or base == 1.0 or base < 0.0) else float(base)
    out = xf * (2.0 * jax.nn.sigmoid(jnp.abs(xf) * scale) - 1.0)
    return out.astype(x.dtype)


if __name__ == "__main__":
    key = jax.random.PRNGKey(0)
    # Typical NCHW activation shape.
    x = jax.random.normal(key, (2, 4, 16, 16), dtype=jnp.float32)

    # base=None path (default module construction).
    out = self_gate(x)
    jax.block_until_ready(out)
    ref = _self_gate_ref(x)
    assert out.shape == x.shape and out.dtype == x.dtype
    assert jnp.allclose(out, ref, atol=1e-5, rtol=1e-5)

    # base != None path.
    out_b = self_gate(x, base=1.5)
    jax.block_until_ready(out_b)
    assert jnp.allclose(out_b, _self_gate_ref(x, base=1.5), atol=1e-5, rtol=1e-5)

    # base < 0 maps back to the base=None behaviour (constructor guard).
    out_neg = self_gate(x, base=-2.0)
    jax.block_until_ready(out_neg)
    assert jnp.allclose(out_neg, _self_gate_ref(x), atol=1e-5, rtol=1e-5)

    # bf16 I/O (halved HBM bytes, f32 internal math).
    xb = x.astype(jnp.bfloat16)
    out_bf = self_gate(xb)
    jax.block_until_ready(out_bf)
    assert out_bf.dtype == jnp.bfloat16
    assert jnp.allclose(out_bf.astype(jnp.float32),
                        _self_gate_ref(xb).astype(jnp.float32),
                        atol=2e-2, rtol=2e-2)

    # Larger shape exercises the multi-step grid (>=4 blocks) path.
    x_big = jax.random.normal(jax.random.PRNGKey(2), (8, 64, 32, 32),
                              dtype=jnp.float32)
    out_big = self_gate(x_big, base=1.5)
    jax.block_until_ready(out_big)
    assert jnp.allclose(out_big, _self_gate_ref(x_big, base=1.5),
                        atol=1e-5, rtol=1e-5)

    # Misaligned element count exercises the fused single-pass jnp fallback.
    x_odd = jax.random.normal(jax.random.PRNGKey(1), (3, 5, 7), dtype=jnp.float32)
    out_odd = self_gate(x_odd)
    jax.block_until_ready(out_odd)
    assert jnp.allclose(out_odd, _self_gate_ref(x_odd), atol=1e-5, rtol=1e-5)

    print("KERNEL_OK")
</pallas_src>

<mosaic_0001>
module attributes {stable_mosaic.version = 11 : i64} {
  func.func @_self_gate_kernel(%arg0: i32, %arg1: memref<2x1024xf32, #tpu.memory_space<vmem>>, %arg2: memref<2x1024xf32, #tpu.memory_space<vmem>>) attributes {dimension_semantics = [#tpu.dimension_semantics<parallel>], iteration_bounds = array<i64: 1>, scalar_prefetch = 0 : i64, scratch_operands = 0 : i64, tpu.core_type = #tpu.core_type<tc>, window_params = [{transform_indices = @transform_0, window_bounds = array<i64: 2, 1024>}, {transform_indices = @transform_1, window_bounds = array<i64: 2, 1024>}]} {
    %c0 = arith.constant 0 : index
    %c0_0 = arith.constant 0 : index
    %0 = vector.load %arg1[%c0, %c0_0] : memref<2x1024xf32, #tpu.memory_space<vmem>>, vector<2x1024xf32>
    %1 = math.absf %0 : vector<2x1024xf32>
    %cst = arith.constant 5.000000e-01 : f32
    %2 = vector.broadcast %cst : f32 to vector<2x1024xf32>
    %3 = arith.mulf %1, %2 : vector<2x1024xf32>
    %4 = math.tanh %3 : vector<2x1024xf32>
    %5 = arith.mulf %0, %4 : vector<2x1024xf32>
    %c0_1 = arith.constant 0 : index
    %c0_2 = arith.constant 0 : index
    %6 = vector.load %arg2[%c0_1, %c0_2] : memref<2x1024xf32, #tpu.memory_space<vmem>>, vector<2x1024xf32>
    tpu.vector_store %arg2[%c0_1, %c0_2], %5 {strides = array<i32>} : memref<2x1024xf32, #tpu.memory_space<vmem>>, vector<2x1024xf32>,
    return
  }
  func.func @transform_0(%arg0: i32) -> (i32, i32) {
    %c0_i32 = arith.constant 0 : i32
    %c0_i32_0 = arith.constant 0 : i32
    return %arg0, %c0_i32 : i32, i32
  }
  func.func @transform_1(%arg0: i32) -> (i32, i32) {
    %c0_i32 = arith.constant 0 : i32
    %c0_i32_0 = arith.constant 0 : i32
    return %arg0, %c0_i32 : i32, i32
  }
}

</mosaic_0001>

<llo_original>
// kernel: tpu_custom_call.1
$region0: #{tpu_custom_call.1}
  #allocation0 [shape = 'u32[]', space=smem, size = 0x4, offset = 0x4, fixed_abs, tag = 'smem constant byte address 0x4 - core index']
  #allocation1 [shape = 'u32[144,128]{1,0:T(1,128)}', space=vmem, size = 0x12000, scoped, tag = 'internal scratch']
  %s0 = inlined_call_operand.hbm [shape: f32[2,1024], index: 0, kind: input, shape index: {}]
  %s1 = inlined_call_operand.hbm [shape: f32[2,1024], index: 1, kind: output, shape index: {}]
  %s2 = sld [smem:[#allocation0]]
  $region18: #{tpu_custom_call.1} parent=0
    _
  %s4 = ssub.s32 1, %s2
  %s5 = scalar_select 0, %s4, %s2
  $region1: #{tpu_custom_call.1} parent=0
    #allocation2 [shape = 'u8[8192]{0}', space=vmem, size = 0x2000, scoped, tag = 'input window, operand 0, single buffered']
    #allocation3 [shape = 's32[1]{0}', space=sflag, size = 0x4, scoped, tag = 'scoped memory for tpu_custom_call.1']
    #allocation4 [shape = 's32[1]{0}', space=sflag, size = 0x4, scoped, tag = 'scoped memory for tpu_custom_call.1']
    #allocation5 [shape = 'u8[8192]{0}', space=vmem, size = 0x2000, scoped, tag = 'output window, operand 0, single buffered']
    %6 = vsyncpa [#allocation3], 0
    %7 = vsyncpa [#allocation4], 0
    // Predicated region
    $region2: #{tpu_custom_call.1} parent=1 // pred_check
      _
    $region3: #{tpu_custom_call.1} parent=1 // pred_check_branch
      %9 = sbr.rel (0) target = $region5
    $region4: #{tpu_custom_call.1} parent=1 // pred_region
      %s11 = ssub.s32 256, 256
      %12 = vsyncadd [#allocation3], %s11
      %s14 = sshll.u32 [#allocation2], 4
      %s15 = int_to_ptr.vmem [resolvable:$true] %s14
      %17 = dma.hbm_to_vmem [thread:$0]  %s0, 256, %s15, [#allocation3]
    $region5: #{tpu_custom_call.1} parent=1 // pred_fallthru
      _
    // Predicated region
    $region6: #{tpu_custom_call.1} parent=1 // pred_check
      _
    $region7: #{tpu_custom_call.1} parent=1 // pred_check_branch
      %19 = sbr.rel (0) target = $region9
    $region8: #{tpu_custom_call.1} parent=1 // pred_region
      %20 = dma.done [#allocation3], 256
    $region9: #{tpu_custom_call.1} parent=1 // pred_fallthru
      _
    %v21 = vld [vmem:[#allocation2] sm:$0xff]
    %v22 = vld [vmem:[#allocation2 + $0x8] sm:$0xff]
    %v23 = vand.u32 2147483647, %v21
    %v24 = vand.u32 2147483647, %v22
    %v25 = vmul.f32 %v23, 0.5
    %v26 = vmul.f32 %v24, 0.5
    %v27 = vtanh.pop %v25
    %v28 = vtanh.pop %v26
    %v29 = vmul.f32 %v21, %v27
    %v30 = vmul.f32 %v22, %v28
    %31 = vst [vmem:[#allocation5] sm:$0xff] %v29
    %32 = vst [vmem:[#allocation5 + $0x8] sm:$0xff] %v30
    // Predicated region
    $region10: #{tpu_custom_call.1} parent=1 // pred_check
      _
    $region11: #{tpu_custom_call.1} parent=1 // pred_check_branch
      %34 = sbr.rel (0) target = $region13
    $region12: #{tpu_custom_call.1} parent=1 // pred_region
      %s36 = ssub.s32 256, 256
      %37 = vsyncadd [#allocation4], %s36
      %s39 = sshll.u32 [#allocation5], 4
      %s40 = int_to_ptr.vmem [resolvable:$true] %s39
      %42 = dma.vmem_to_hbm [thread:$0]  %s40, 256, %s1, [#allocation4]
    $region13: #{tpu_custom_call.1} parent=1 // pred_fallthru
      _
    // Predicated region
    $region14: #{tpu_custom_call.1} parent=1 // pred_check
      _
    $region15: #{tpu_custom_call.1} parent=1 // pred_check_branch
      %44 = sbr.rel (0) target = $region17
    $region16: #{tpu_custom_call.1} parent=1 // pred_region
      %45 = dma.done [#allocation4], 256
    $region17: #{tpu_custom_call.1} parent=1 // pred_fallthru
      _
    %46 = vsyncpa [#allocation3], 1
    %47 = vsyncpa [#allocation4], 1

</llo_original>
